<compile_context>
chip_gen: v7x
topology: tpu7x:2x2x1
jax: 0.10.0
libtpu: 0.0.40
codegen_flags: <defaults>
</compile_context>

<pallas_src>
import math

import jax
import jax.numpy as jnp
from jax import lax
from jax.experimental import pallas as pl
from jax.experimental.pallas import tpu as pltpu

NUM_POINTS = 4          # points per tetris piece
NUM_SCALAR_FEATS = 8    # '8x0e' input scalars
LIN_OUT_SCALARS = 6     # '6x0e'
LIN_OUT_VECTORS = 4     # '4x1o'
OUT_SCALARS = 7         # '7x0e'
RBF_SPACING = 0.5
RBF_SIGMA = 0.5
_EPS = 1e-12
K_PAD = 72              # 64 quadratic feats + |v|^2 + 1 (bias) + 6 zero pad (8-aligned)


# ----------------------------------------------------------------------------- kernel
def tensor_dense_kernel(pos_ref, w_ref, out_ref):
    """pos_ref: (3N, B_tile) coordinate-major (x of pts 0..N-1, then y, then z),
       w_ref  : (C, K_PAD) folded weights [W'_flat(64) | c_out | bias | 0 pad],
       out_ref: (C, B_tile) logits, batch on lanes."""
    n = NUM_POINTS
    k = NUM_SCALAR_FEATS
    inv_n = 1.0 / n

    pos = pos_ref[...]                                   # (3N, Bt)
    bt = pos.shape[1]

    # 1. center each piece: per-axis means, then one full-slab subtract
    mx = jnp.sum(pos[0 * n:1 * n, :], axis=0, keepdims=True) * inv_n   # (1, Bt)
    my = jnp.sum(pos[1 * n:2 * n, :], axis=0, keepdims=True) * inv_n
    mz = jnp.sum(pos[2 * n:3 * n, :], axis=0, keepdims=True) * inv_n
    mean_slab = jnp.concatenate([jnp.broadcast_to(mx, (n, bt)),
                                 jnp.broadcast_to(my, (n, bt)),
                                 jnp.broadcast_to(mz, (n, bt))], axis=0)  # (3N, Bt)
    cen = pos - mean_slab                                # (3N, Bt)

    # 2. radial / angular decomposition on the full slab (rsqrt -> EUP, no divide)
    sq = cen * cen                                       # (3N, Bt)
    r2 = sq[0 * n:1 * n, :] + sq[1 * n:2 * n, :] + sq[2 * n:3 * n, :]   # (N, Bt)
    inv_r = lax.rsqrt(r2 + _EPS)
    r = r2 * inv_r                                       # |r|

    inv_slab = jnp.concatenate([inv_r, inv_r, inv_r], axis=0)           # (3N, Bt)
    d = cen * inv_slab                                   # unit directions, (3N, Bt)
    vx = jnp.sum(d[0 * n:1 * n, :], axis=0, keepdims=True) * inv_n
    vy = jnp.sum(d[1 * n:2 * n, :], axis=0, keepdims=True) * inv_n
    vz = jnp.sum(d[2 * n:3 * n, :], axis=0, keepdims=True) * inv_n
    vnorm2 = vx * vx + vy * vy + vz * vz                 # (1, Bt)
    # NOTE: 2e features never reach '7x0e' (linear1/linear2 output '6x0e+4x1o'),
    # so the 2e spherical-harmonic block is dead code and not computed.

    # 3. '8x0e' Gaussian RBFs with only 2 EUP exps:
    #    exp(-g(r-c_k)^2) = base * t^k * e_k ; e_k is folded into the weights.
    gain = 1.0 / (2.0 * RBF_SIGMA * RBF_SIGMA)
    base = jnp.exp(-gain * r2)                           # (N, Bt)
    t = jnp.exp((2.0 * gain * RBF_SPACING) * r)          # (N, Bt)
    rows = []
    term = base
    rows.append(jnp.sum(term, axis=0, keepdims=True) * inv_n)
    for _ in range(k - 1):
        term = term * t
        rows.append(jnp.sum(term, axis=0, keepdims=True) * inv_n)
    s = jnp.concatenate(rows, axis=0)                    # (K=8, Bt), un-scaled s'_avg

    # 4. quadratic features + |v|^2 row + ones row + zero pad  -> (K_PAD, Bt)
    q_blocks = [s[i:i + 1, :] * s for i in range(k)]     # 8 x (8, Bt)
    ones_row = jnp.ones((1, bt), jnp.float32)
    zero_pad = jnp.zeros((K_PAD - k * k - 2, bt), jnp.float32)
    q = jnp.concatenate(q_blocks + [vnorm2, ones_row, zero_pad], axis=0)  # (72, Bt)

    # 5. single lane-batched MXU contraction: (C, 72) @ (72, Bt) -> (C, Bt)
    #    explicit HIGHEST precision on this dot only (C is tiny, MXU is nowhere
    #    near the bottleneck, so the extra passes are free accuracy).
    out_ref[...] = jnp.dot(w_ref[...], q,
                           preferred_element_type=jnp.float32,
                           precision=lax.Precision.HIGHEST)


# ------------------------------------------------------------------------ host helpers
def fold_weights(params):
    """Fold linear1/linear2/tensor-product/linear3/output-MLP and the per-center RBF
    constants into a (C, K_PAD) buffer:
       cols [0:64] = W'[c,i,j] = W_out[c,i,j]*e_i*e_j (row-major i,j),
       [64] = c_out, [65] = bias, [66:72] = 0."""
    hp = lax.Precision.HIGHEST
    sqrt3 = math.sqrt(3.0)
    # 0e path: s1 = s W1, s2 = s W2, scal_a[k] = sum_ab W3_00[k,a,b] s1[a] s2[b]
    w_eff7 = jnp.einsum("kab,ia,jb->kij", params["w3_00"],
                        params["w1_0e"], params["w2_0e"], precision=hp)     # (7,8,8)
    # 1o path collapses to a scalar per k times |v_avg|^2
    c7 = jnp.einsum("kab,a,b->k", params["w3_11"],
                    params["w1_1o"][:, 0], params["w2_1o"][:, 0],
                    precision=hp) / sqrt3                                   # (7,)
    # fold the output MLP
    w_out = jnp.einsum("kc,kij->cij", params["wmlp"], w_eff7, precision=hp)  # (C,8,8)
    c_out = jnp.einsum("kc,k->c", params["wmlp"], c7, precision=hp)          # (C,)
    # fold the per-center RBF constants exp(-g c_k^2) (exact):
    gain = 1.0 / (2.0 * RBF_SIGMA * RBF_SIGMA)
    centers = jnp.arange(NUM_SCALAR_FEATS, dtype=jnp.float32) * RBF_SPACING
    e = jnp.exp(-gain * centers * centers)                                   # (8,)
    w_out = w_out * e[None, :, None] * e[None, None, :]

    num_classes = params["wmlp"].shape[1]
    w_flat = w_out.reshape(num_classes, NUM_SCALAR_FEATS * NUM_SCALAR_FEATS)
    cols = jnp.concatenate([w_flat, c_out[:, None], params["bmlp"].T], axis=1)  # (C,66)
    pad = jnp.zeros((num_classes, K_PAD - cols.shape[1]), jnp.float32)
    return jnp.concatenate([cols, pad], axis=1)                              # (C,72)


def _round_up(x, m):
    return ((x + m - 1) // m) * m


def _effective_tile(num_pieces, b_tile):
    """Lane-aligned batch tile: big enough to amortize per-step dispatch/DMA, but
    never padding past the batch, and keeping >=2 grid steps when the batch allows
    it (v7x megacore sharding + double-buffer overlap)."""
    bt = max(128, (int(b_tile) // 128) * 128)
    bt = min(bt, _round_up(num_pieces, 128))
    if num_pieces > 128:
        bt = min(bt, _round_up(pl.cdiv(num_pieces, 2), 128))
    return max(bt, 128)


def simple_model_forward(positions, params, *, b_tile=512, batch_major=True):
    """positions: (B, N, 3) float -> logits (B, C) (or (C, B) if batch_major=False,
    which avoids an extra HBM transpose pass for large B)."""
    positions = positions.astype(jnp.float32)
    num_pieces, n_pts, _ = positions.shape
    assert n_pts == NUM_POINTS
    num_classes = params["wmlp"].shape[1]

    wbuf = fold_weights(params)                                 # (C, K_PAD)

    # coordinate-major, batch-on-lanes layout: rows = [x pts 0..N-1, y ..., z ...]
    pos2d = jnp.transpose(positions, (2, 1, 0)).reshape(3 * NUM_POINTS, num_pieces)
    bt = _effective_tile(num_pieces, b_tile)
    n_tiles = pl.cdiv(num_pieces, bt)
    b_pad = n_tiles * bt
    if b_pad != num_pieces:
        pos2d = jnp.pad(pos2d, ((0, 0), (0, b_pad - num_pieces)))

    out = pl.pallas_call(
        tensor_dense_kernel,
        out_shape=jax.ShapeDtypeStruct((num_classes, b_pad), jnp.float32),
        grid_spec=pltpu.PrefetchScalarGridSpec(
            num_scalar_prefetch=0,
            grid=(n_tiles,),
            in_specs=[
                pl.BlockSpec((3 * NUM_POINTS, bt), lambda i: (0, i)),
                # folded weights: constant index_map -> DMA'd once, VMEM-resident
                pl.BlockSpec((num_classes, K_PAD), lambda i: (0, 0)),
            ],
            out_specs=pl.BlockSpec((num_classes, bt), lambda i: (0, i)),
        ),
        compiler_params=pltpu.CompilerParams(
            dimension_semantics=("parallel",)),     # v7x: shard batch over 2 TCs
    )(pos2d, wbuf)

    out = out[:, :num_pieces]                                   # (C, B)
    return out.T if batch_major else out


def init_params(key, num_classes):
    ks = jax.random.split(key, 8)

    def w(k, shape, fan_in):
        return jax.random.normal(k, shape, jnp.float32) / jnp.sqrt(float(fan_in))

    tp_0e_dim = LIN_OUT_SCALARS * LIN_OUT_SCALARS + LIN_OUT_VECTORS * LIN_OUT_VECTORS  # 52
    return dict(
        w1_0e=w(ks[0], (NUM_SCALAR_FEATS, LIN_OUT_SCALARS), NUM_SCALAR_FEATS),   # (8, 6)
        w1_1o=w(ks[1], (LIN_OUT_VECTORS, 1), 1),                                 # (4, 1)
        w2_0e=w(ks[2], (NUM_SCALAR_FEATS, LIN_OUT_SCALARS), NUM_SCALAR_FEATS),   # (8, 6)
        w2_1o=w(ks[3], (LIN_OUT_VECTORS, 1), 1),                                 # (4, 1)
        w3_00=w(ks[4], (OUT_SCALARS, LIN_OUT_SCALARS, LIN_OUT_SCALARS), tp_0e_dim),  # (7,6,6)
        w3_11=w(ks[5], (OUT_SCALARS, LIN_OUT_VECTORS, LIN_OUT_VECTORS), tp_0e_dim),  # (7,4,4)
        wmlp=w(ks[6], (OUT_SCALARS, num_classes), OUT_SCALARS),                  # (7, C)
        bmlp=jax.random.uniform(ks[7], (1, num_classes), jnp.float32,
                                minval=-1.0 / math.sqrt(OUT_SCALARS),
                                maxval=1.0 / math.sqrt(OUT_SCALARS)),
    )


# ----------------------------------------------------------- pure-JAX reference (unfolded)
def reference_forward(positions, params):
    with jax.default_matmul_precision("highest"):
        positions = positions.astype(jnp.float32)
        centered = positions - jnp.mean(positions, axis=1, keepdims=True)      # (B,N,3)
        r2 = jnp.sum(centered * centered, axis=-1, keepdims=True)              # (B,N,1)
        inv_r = lax.rsqrt(r2 + _EPS)
        r = r2 * inv_r
        d = centered * inv_r
        centers = jnp.arange(NUM_SCALAR_FEATS, dtype=jnp.float32) * RBF_SPACING
        gain = 1.0 / (2.0 * RBF_SIGMA * RBF_SIGMA)
        scal = jnp.exp(-((r - centers[None, None, :]) ** 2) * gain)            # (B,N,8)
        s_avg = jnp.mean(scal, axis=1)                                         # (B,8)
        v_avg = jnp.mean(d, axis=1)                                            # (B,3)

        s1 = s_avg @ params["w1_0e"]                                           # (B,6)
        s2 = s_avg @ params["w2_0e"]
        v1 = params["w1_1o"][None, :, :] * v_avg[:, None, :]                   # (B,4,3)
        v2 = params["w2_1o"][None, :, :] * v_avg[:, None, :]

        scal_a = jnp.einsum("kab,na,nb->nk", params["w3_00"], s1, s2)          # (B,7)
        tp11 = jnp.einsum("nam,nbm->nab", v1, v2) / math.sqrt(3.0)             # (B,4,4)
        scal_b = jnp.einsum("kab,nab->nk", params["w3_11"], tp11)              # (B,7)
        return (scal_a + scal_b) @ params["wmlp"] + params["bmlp"]             # (B,C)


if __name__ == "__main__":
    key = jax.random.PRNGKey(0)
    kpos, kparam = jax.random.split(key)

    num_pieces, num_classes = 256, 8          # 256 four-point "tetris" pieces
    positions = jax.random.normal(kpos, (num_pieces, NUM_POINTS, 3), jnp.float32)
    params = init_params(kparam, num_classes)

    fwd = jax.jit(simple_model_forward, static_argnames=("b_tile", "batch_major"))
    logits = fwd(positions, params, b_tile=512)
    jax.block_until_ready(logits)
    assert logits.shape == (num_pieces, num_classes) and logits.dtype == jnp.float32

    ref = reference_forward(positions, params)
    err = float(jnp.max(jnp.abs(logits - ref)))
    assert err < 3e-3, f"kernel disagrees with pure-JAX reference: max |err| = {err}"
    print("KERNEL_OK")
</pallas_src>

<mosaic_0001>
module attributes {stable_mosaic.version = 11 : i64} {
  func.func @tensor_dense_kernel(%arg0: i32, %arg1: memref<12x128xf32, #tpu.memory_space<vmem>>, %arg2: memref<8x72xf32, #tpu.memory_space<vmem>>, %arg3: memref<8x128xf32, #tpu.memory_space<vmem>>) attributes {dimension_semantics = [#tpu.dimension_semantics<parallel>], iteration_bounds = array<i64: 2>, scalar_prefetch = 0 : i64, scratch_operands = 0 : i64, tpu.core_type = #tpu.core_type<tc>, window_params = [{transform_indices = @transform_0, window_bounds = array<i64: 12, 128>}, {pipeline_mode = #tpu.pipeline_mode<synchronous>, transform_indices = @transform_1, window_bounds = array<i64: 8, 72>}, {transform_indices = @transform_2, window_bounds = array<i64: 8, 128>}]} {
    %c0 = arith.constant 0 : index
    %c0_0 = arith.constant 0 : index
    %0 = vector.load %arg1[%c0, %c0_0] : memref<12x128xf32, #tpu.memory_space<vmem>>, vector<12x128xf32>
    %1 = vector.extract_strided_slice %0 {offsets = [0, 0], sizes = [4, 128], strides = [1, 1]} : vector<12x128xf32> to vector<4x128xf32>
    %cst = arith.constant dense<0.000000e+00> : vector<128xf32>
    %2 = vector.multi_reduction <add>, %1, %cst [0] : vector<4x128xf32> to vector<128xf32>
    %3 = vector.shape_cast %2 : vector<128xf32> to vector<1x128xf32>
    %cst_1 = arith.constant 2.500000e-01 : f32
    %4 = vector.broadcast %cst_1 : f32 to vector<1x128xf32>
    %5 = arith.mulf %3, %4 : vector<1x128xf32>
    %6 = vector.extract_strided_slice %0 {offsets = [4, 0], sizes = [4, 128], strides = [1, 1]} : vector<12x128xf32> to vector<4x128xf32>
    %cst_2 = arith.constant dense<0.000000e+00> : vector<128xf32>
    %7 = vector.multi_reduction <add>, %6, %cst_2 [0] : vector<4x128xf32> to vector<128xf32>
    %8 = vector.shape_cast %7 : vector<128xf32> to vector<1x128xf32>
    %cst_3 = arith.constant 2.500000e-01 : f32
    %9 = vector.broadcast %cst_3 : f32 to vector<1x128xf32>
    %10 = arith.mulf %8, %9 : vector<1x128xf32>
    %11 = vector.extract_strided_slice %0 {offsets = [8, 0], sizes = [4, 128], strides = [1, 1]} : vector<12x128xf32> to vector<4x128xf32>
    %cst_4 = arith.constant dense<0.000000e+00> : vector<128xf32>
    %12 = vector.multi_reduction <add>, %11, %cst_4 [0] : vector<4x128xf32> to vector<128xf32>
    %13 = vector.shape_cast %12 : vector<128xf32> to vector<1x128xf32>
    %cst_5 = arith.constant 2.500000e-01 : f32
    %14 = vector.broadcast %cst_5 : f32 to vector<1x128xf32>
    %15 = arith.mulf %13, %14 : vector<1x128xf32>
    %16 = vector.shape_cast %5 : vector<1x128xf32> to vector<1x128xf32>
    %17 = vector.broadcast %16 : vector<1x128xf32> to vector<4x128xf32>
    %18 = vector.shape_cast %10 : vector<1x128xf32> to vector<1x128xf32>
    %19 = vector.broadcast %18 : vector<1x128xf32> to vector<4x128xf32>
    %20 = vector.shape_cast %15 : vector<1x128xf32> to vector<1x128xf32>
    %21 = vector.broadcast %20 : vector<1x128xf32> to vector<4x128xf32>
    %22 = tpu.concatenate %17, %19, %21 in 0 : vector<4x128xf32>, vector<4x128xf32>, vector<4x128xf32> -> vector<12x128xf32>
    %23 = arith.subf %0, %22 : vector<12x128xf32>
    %24 = arith.mulf %23, %23 : vector<12x128xf32>
    %25 = vector.extract_strided_slice %24 {offsets = [0, 0], sizes = [4, 128], strides = [1, 1]} : vector<12x128xf32> to vector<4x128xf32>
    %26 = vector.extract_strided_slice %24 {offsets = [4, 0], sizes = [4, 128], strides = [1, 1]} : vector<12x128xf32> to vector<4x128xf32>
    %27 = arith.addf %25, %26 : vector<4x128xf32>
    %28 = vector.extract_strided_slice %24 {offsets = [8, 0], sizes = [4, 128], strides = [1, 1]} : vector<12x128xf32> to vector<4x128xf32>
    %29 = arith.addf %27, %28 : vector<4x128xf32>
    %cst_6 = arith.constant 9.99999996E-13 : f32
    %30 = vector.broadcast %cst_6 : f32 to vector<4x128xf32>
    %31 = arith.addf %29, %30 : vector<4x128xf32>
    %32 = math.rsqrt %31 : vector<4x128xf32>
    %33 = arith.mulf %29, %32 : vector<4x128xf32>
    %34 = tpu.concatenate %32, %32, %32 in 0 : vector<4x128xf32>, vector<4x128xf32>, vector<4x128xf32> -> vector<12x128xf32>
    %35 = arith.mulf %23, %34 : vector<12x128xf32>
    %36 = vector.extract_strided_slice %35 {offsets = [0, 0], sizes = [4, 128], strides = [1, 1]} : vector<12x128xf32> to vector<4x128xf32>
    %cst_7 = arith.constant dense<0.000000e+00> : vector<128xf32>
    %37 = vector.multi_reduction <add>, %36, %cst_7 [0] : vector<4x128xf32> to vector<128xf32>
    %38 = vector.shape_cast %37 : vector<128xf32> to vector<1x128xf32>
    %cst_8 = arith.constant 2.500000e-01 : f32
    %39 = vector.broadcast %cst_8 : f32 to vector<1x128xf32>
    %40 = arith.mulf %38, %39 : vector<1x128xf32>
    %41 = vector.extract_strided_slice %35 {offsets = [4, 0], sizes = [4, 128], strides = [1, 1]} : vector<12x128xf32> to vector<4x128xf32>
    %cst_9 = arith.constant dense<0.000000e+00> : vector<128xf32>
    %42 = vector.multi_reduction <add>, %41, %cst_9 [0] : vector<4x128xf32> to vector<128xf32>
    %43 = vector.shape_cast %42 : vector<128xf32> to vector<1x128xf32>
    %cst_10 = arith.constant 2.500000e-01 : f32
    %44 = vector.broadcast %cst_10 : f32 to vector<1x128xf32>
    %45 = arith.mulf %43, %44 : vector<1x128xf32>
    %46 = vector.extract_strided_slice %35 {offsets = [8, 0], sizes = [4, 128], strides = [1, 1]} : vector<12x128xf32> to vector<4x128xf32>
    %cst_11 = arith.constant dense<0.000000e+00> : vector<128xf32>
    %47 = vector.multi_reduction <add>, %46, %cst_11 [0] : vector<4x128xf32> to vector<128xf32>
    %48 = vector.shape_cast %47 : vector<128xf32> to vector<1x128xf32>
    %cst_12 = arith.constant 2.500000e-01 : f32
    %49 = vector.broadcast %cst_12 : f32 to vector<1x128xf32>
    %50 = arith.mulf %48, %49 : vector<1x128xf32>
    %51 = arith.mulf %40, %40 : vector<1x128xf32>
    %52 = arith.mulf %45, %45 : vector<1x128xf32>
    %53 = arith.addf %51, %52 : vector<1x128xf32>
    %54 = arith.mulf %50, %50 : vector<1x128xf32>
    %55 = arith.addf %53, %54 : vector<1x128xf32>
    %cst_13 = arith.constant -2.000000e+00 : f32
    %56 = vector.broadcast %cst_13 : f32 to vector<4x128xf32>
    %57 = arith.mulf %56, %29 : vector<4x128xf32>
    %58 = math.exp %57 : vector<4x128xf32>
    %cst_14 = arith.constant 2.000000e+00 : f32
    %59 = vector.broadcast %cst_14 : f32 to vector<4x128xf32>
    %60 = arith.mulf %59, %33 : vector<4x128xf32>
    %61 = math.exp %60 : vector<4x128xf32>
    %cst_15 = arith.constant dense<0.000000e+00> : vector<128xf32>
    %62 = vector.multi_reduction <add>, %58, %cst_15 [0] : vector<4x128xf32> to vector<128xf32>
    %63 = vector.shape_cast %62 : vector<128xf32> to vector<1x128xf32>
    %cst_16 = arith.constant 2.500000e-01 : f32
    %64 = vector.broadcast %cst_16 : f32 to vector<1x128xf32>
    %65 = arith.mulf %63, %64 : vector<1x128xf32>
    %66 = arith.mulf %58, %61 : vector<4x128xf32>
    %cst_17 = arith.constant dense<0.000000e+00> : vector<128xf32>
    %67 = vector.multi_reduction <add>, %66, %cst_17 [0] : vector<4x128xf32> to vector<128xf32>
    %68 = vector.shape_cast %67 : vector<128xf32> to vector<1x128xf32>
    %cst_18 = arith.constant 2.500000e-01 : f32
    %69 = vector.broadcast %cst_18 : f32 to vector<1x128xf32>
    %70 = arith.mulf %68, %69 : vector<1x128xf32>
    %71 = arith.mulf %66, %61 : vector<4x128xf32>
    %cst_19 = arith.constant dense<0.000000e+00> : vector<128xf32>
    %72 = vector.multi_reduction <add>, %71, %cst_19 [0] : vector<4x128xf32> to vector<128xf32>
    %73 = vector.shape_cast %72 : vector<128xf32> to vector<1x128xf32>
    %cst_20 = arith.constant 2.500000e-01 : f32
    %74 = vector.broadcast %cst_20 : f32 to vector<1x128xf32>
    %75 = arith.mulf %73, %74 : vector<1x128xf32>
    %76 = arith.mulf %71, %61 : vector<4x128xf32>
    %cst_21 = arith.constant dense<0.000000e+00> : vector<128xf32>
    %77 = vector.multi_reduction <add>, %76, %cst_21 [0] : vector<4x128xf32> to vector<128xf32>
    %78 = vector.shape_cast %77 : vector<128xf32> to vector<1x128xf32>
    %cst_22 = arith.constant 2.500000e-01 : f32
    %79 = vector.broadcast %cst_22 : f32 to vector<1x128xf32>
    %80 = arith.mulf %78, %79 : vector<1x128xf32>
    %81 = arith.mulf %76, %61 : vector<4x128xf32>
    %cst_23 = arith.constant dense<0.000000e+00> : vector<128xf32>
    %82 = vector.multi_reduction <add>, %81, %cst_23 [0] : vector<4x128xf32> to vector<128xf32>
    %83 = vector.shape_cast %82 : vector<128xf32> to vector<1x128xf32>
    %cst_24 = arith.constant 2.500000e-01 : f32
    %84 = vector.broadcast %cst_24 : f32 to vector<1x128xf32>
    %85 = arith.mulf %83, %84 : vector<1x128xf32>
    %86 = arith.mulf %81, %61 : vector<4x128xf32>
    %cst_25 = arith.constant dense<0.000000e+00> : vector<128xf32>
    %87 = vector.multi_reduction <add>, %86, %cst_25 [0] : vector<4x128xf32> to vector<128xf32>
    %88 = vector.shape_cast %87 : vector<128xf32> to vector<1x128xf32>
    %cst_26 = arith.constant 2.500000e-01 : f32
    %89 = vector.broadcast %cst_26 : f32 to vector<1x128xf32>
    %90 = arith.mulf %88, %89 : vector<1x128xf32>
    %91 = arith.mulf %86, %61 : vector<4x128xf32>
    %cst_27 = arith.constant dense<0.000000e+00> : vector<128xf32>
    %92 = vector.multi_reduction <add>, %91, %cst_27 [0] : vector<4x128xf32> to vector<128xf32>
    %93 = vector.shape_cast %92 : vector<128xf32> to vector<1x128xf32>
    %cst_28 = arith.constant 2.500000e-01 : f32
    %94 = vector.broadcast %cst_28 : f32 to vector<1x128xf32>
    %95 = arith.mulf %93, %94 : vector<1x128xf32>
    %96 = arith.mulf %91, %61 : vector<4x128xf32>
    %cst_29 = arith.constant dense<0.000000e+00> : vector<128xf32>
    %97 = vector.multi_reduction <add>, %96, %cst_29 [0] : vector<4x128xf32> to vector<128xf32>
    %98 = vector.shape_cast %97 : vector<128xf32> to vector<1x128xf32>
    %cst_30 = arith.constant 2.500000e-01 : f32
    %99 = vector.broadcast %cst_30 : f32 to vector<1x128xf32>
    %100 = arith.mulf %98, %99 : vector<1x128xf32>
    %101 = tpu.concatenate %65, %70, %75, %80, %85, %90, %95, %100 in 0 : vector<1x128xf32>, vector<1x128xf32>, vector<1x128xf32>, vector<1x128xf32>, vector<1x128xf32>, vector<1x128xf32>, vector<1x128xf32>, vector<1x128xf32> -> vector<8x128xf32>
    %102 = vector.extract_strided_slice %101 {offsets = [0, 0], sizes = [1, 128], strides = [1, 1]} : vector<8x128xf32> to vector<1x128xf32>
    %103 = vector.broadcast %102 : vector<1x128xf32> to vector<8x128xf32>
    %104 = arith.mulf %103, %101 : vector<8x128xf32>
    %105 = vector.extract_strided_slice %101 {offsets = [1, 0], sizes = [1, 128], strides = [1, 1]} : vector<8x128xf32> to vector<1x128xf32>
    %106 = vector.broadcast %105 : vector<1x128xf32> to vector<8x128xf32>
    %107 = arith.mulf %106, %101 : vector<8x128xf32>
    %108 = vector.extract_strided_slice %101 {offsets = [2, 0], sizes = [1, 128], strides = [1, 1]} : vector<8x128xf32> to vector<1x128xf32>
    %109 = vector.broadcast %108 : vector<1x128xf32> to vector<8x128xf32>
    %110 = arith.mulf %109, %101 : vector<8x128xf32>
    %111 = vector.extract_strided_slice %101 {offsets = [3, 0], sizes = [1, 128], strides = [1, 1]} : vector<8x128xf32> to vector<1x128xf32>
    %112 = vector.broadcast %111 : vector<1x128xf32> to vector<8x128xf32>
    %113 = arith.mulf %112, %101 : vector<8x128xf32>
    %114 = vector.extract_strided_slice %101 {offsets = [4, 0], sizes = [1, 128], strides = [1, 1]} : vector<8x128xf32> to vector<1x128xf32>
    %115 = vector.broadcast %114 : vector<1x128xf32> to vector<8x128xf32>
    %116 = arith.mulf %115, %101 : vector<8x128xf32>
    %117 = vector.extract_strided_slice %101 {offsets = [5, 0], sizes = [1, 128], strides = [1, 1]} : vector<8x128xf32> to vector<1x128xf32>
    %118 = vector.broadcast %117 : vector<1x128xf32> to vector<8x128xf32>
    %119 = arith.mulf %118, %101 : vector<8x128xf32>
    %120 = vector.extract_strided_slice %101 {offsets = [6, 0], sizes = [1, 128], strides = [1, 1]} : vector<8x128xf32> to vector<1x128xf32>
    %121 = vector.broadcast %120 : vector<1x128xf32> to vector<8x128xf32>
    %122 = arith.mulf %121, %101 : vector<8x128xf32>
    %123 = vector.extract_strided_slice %101 {offsets = [7, 0], sizes = [1, 128], strides = [1, 1]} : vector<8x128xf32> to vector<1x128xf32>
    %124 = vector.broadcast %123 : vector<1x128xf32> to vector<8x128xf32>
    %125 = arith.mulf %124, %101 : vector<8x128xf32>
    %cst_31 = arith.constant 1.000000e+00 : f32
    %126 = vector.broadcast %cst_31 : f32 to vector<1x128xf32>
    %cst_32 = arith.constant 0.000000e+00 : f32
    %127 = vector.broadcast %cst_32 : f32 to vector<6x128xf32>
    %128 = tpu.concatenate %104, %107, %110, %113, %116, %119, %122, %125, %55, %126, %127 in 0 : vector<8x128xf32>, vector<8x128xf32>, vector<8x128xf32>, vector<8x128xf32>, vector<8x128xf32>, vector<8x128xf32>, vector<8x128xf32>, vector<8x128xf32>, vector<1x128xf32>, vector<1x128xf32>, vector<6x128xf32> -> vector<72x128xf32>
    %c0_33 = arith.constant 0 : index
    %c0_34 = arith.constant 0 : index
    %129 = vector.load %arg2[%c0_33, %c0_34] : memref<8x72xf32, #tpu.memory_space<vmem>>, vector<8x72xf32>
    %cst_35 = arith.constant dense<0.000000e+00> : vector<8x128xf32>
    %130 = tpu.matmul %129, %128, %cst_35 {dimension_numbers = #tpu.dot_dimension_numbers<[1], [0], [0], [1], [0, 0, 1, 1], [], []>, precision = #tpu.contract_precision<fp32>} : vector<8x72xf32>, vector<72x128xf32>, vector<8x128xf32> -> vector<8x128xf32>
    %c0_36 = arith.constant 0 : index
    %c0_37 = arith.constant 0 : index
    %131 = vector.load %arg3[%c0_36, %c0_37] : memref<8x128xf32, #tpu.memory_space<vmem>>, vector<8x128xf32>
    tpu.vector_store %arg3[%c0_36, %c0_37], %130 {strides = array<i32>} : memref<8x128xf32, #tpu.memory_space<vmem>>, vector<8x128xf32>,
    return
  }
  func.func @transform_0(%arg0: i32) -> (i32, i32) {
    %c0_i32 = arith.constant 0 : i32
    %c0_i32_0 = arith.constant 0 : i32
    return %c0_i32, %arg0 : i32, i32
  }
  func.func @transform_1(%arg0: i32) -> (i32, i32) {
    %c0_i32 = arith.constant 0 : i32
    %c0_i32_0 = arith.constant 0 : i32
    %c0_i32_1 = arith.constant 0 : i32
    return %c0_i32, %c0_i32_0 : i32, i32
  }
  func.func @transform_2(%arg0: i32) -> (i32, i32) {
    %c0_i32 = arith.constant 0 : i32
    %c0_i32_0 = arith.constant 0 : i32
    return %c0_i32, %arg0 : i32, i32
  }
}

</mosaic_0001>

<llo_original>
// kernel: simple_model_forward.1
$region0: #{simple_model_forward.1}
  #allocation0 [shape = 'u32[]', space=smem, size = 0x4, offset = 0x4, fixed_abs, tag = 'smem constant byte address 0x4 - core index']
  #allocation1 [shape = 'u32[144,128]{1,0:T(1,128)}', space=vmem, size = 0x12000, scoped, tag = 'internal scratch']
  %s0 = inlined_call_operand.vmem [shape: f32[12,256], index: 0, kind: input, shape index: {}]
  %s1 = inlined_call_operand.vmem [shape: f32[8,72], index: 1, kind: input, shape index: {}]
  %s2 = inlined_call_operand.hbm [shape: f32[8,256], index: 2, kind: output, shape index: {}]
  %s3 = sld [smem:[#allocation0]]
  $region79: #{simple_model_forward.1} parent=0
    _
  %s5 = ssub.s32 1, %s3
  %s6 = scalar_select 0, %s5, %s3
  $region1: #{simple_model_forward.1} parent=0
    #allocation2 [shape = 'u8[16384]{0}', space=vmem, size = 0x4000, scoped, tag = 'input window, operand 0']
    #allocation3 [shape = 'u8[8192]{0}', space=vmem, size = 0x2000, scoped, tag = 'output window, operand 0']
    #allocation4 [shape = 's32[2]{0}', space=sflag, size = 0x8, scoped, tag = 'scoped memory for simple_model_forward.1']
    %7 = vsyncpa [#allocation4], 0
    %s8 = scalar_lea.sflag [#allocation4], 1
    %9 = vsyncpa %s8, 0
    loop: start=0, step=1, limit=4
    $region2: #{simple_model_forward.1} parent=1 // loop_pre_header
      _
    $region3: #{simple_model_forward.1} parent=1 // loop_header
      %s11 = sphi 0, %s15
      %p12 = scmp.ge.s32.totalorder %s11, 4
      %s21 = sphi 0, %s23
      %s24 = sphi 0, %s21
      %s25 = sphi 0, %s24
      %s41 = sphi 0, %s25
      %s45 = sphi 0, %s45
      %s47 = sphi 0, %s45
      %s48 = sphi 0, %s47
      %s62 = sphi 0, %s48
      %s68 = sphi 0, %s70
      %s71 = sphi 0, %s68
      %s72 = sphi 0, %s71
      %s88 = sphi 0, %s72
    $region4: #{simple_model_forward.1} parent=1 // loop_header_branch
      %14 = sbr.rel (%p12) target = $region8
    $region5: #{simple_model_forward.1} parent=1 // loop_body
      %s16 = ssub.s32 %s11, 1
      %s17 = ssub.s32 %s11, 2
      %s18 = sadd.s32 %s11, 1
      %s19 = ssub.s32 %s11, %s18
      %p20 = scmp.eq.s32.totalorder %s19, 0
      %s22 = sadd.s32 %s21, 1
      %s23 = scalar_select %p20, %s21, %s22
      %p26 = pneg %p20
      %p27 = scmp.eq.s32.totalorder %s11, 1
      %p28 = por %p26, %p27
      %p29 = scmp.ne.s32.totalorder %s21, %s24
      %p30 = scmp.eq.s32.totalorder %s11, 0
      %p31 = por %p29, %p30
      %p32 = scmp.ne.s32.totalorder %s21, %s24
      %p33 = scmp.eq.s32.totalorder %s16, 1
      %p34 = por %p32, %p33
      %p35 = scmp.ne.s32.totalorder %s24, %s25
      %p36 = scmp.eq.s32.totalorder %s16, 0
      %p37 = por %p35, %p36
      %p38 = scmp.ne.s32.totalorder %s24, %s25
      %p39 = scmp.eq.s32.totalorder %s17, 1
      %p40 = por %p38, %p39
      %p42 = scmp.ne.s32.totalorder %s25, %s41
      %p43 = scmp.eq.s32.totalorder %s17, 0
      %p44 = por %p42, %p43
      %s46 = sadd.s32 %s45, 1
      %p49 = scmp.eq.s32.totalorder %s11, 1
      %p50 = scmp.ne.s32.totalorder %s45, %s47
      %p51 = scmp.eq.s32.totalorder %s11, 0
      %p52 = por %p50, %p51
      %p53 = scmp.ne.s32.totalorder %s45, %s47
      %p54 = scmp.eq.s32.totalorder %s16, 1
      %p55 = por %p53, %p54
      %p56 = scmp.ne.s32.totalorder %s47, %s48
      %p57 = scmp.eq.s32.totalorder %s16, 0
      %p58 = por %p56, %p57
      %p59 = scmp.ne.s32.totalorder %s47, %s48
      %p60 = scmp.eq.s32.totalorder %s17, 1
      %p61 = por %p59, %p60
      %p63 = scmp.ne.s32.totalorder %s48, %s62
      %p64 = scmp.eq.s32.totalorder %s17, 0
      %p65 = por %p63, %p64
      %s66 = ssub.s32 %s11, %s18
      %p67 = scmp.eq.s32.totalorder %s66, 0
      %s69 = sadd.s32 %s68, 1
      %s70 = scalar_select %p67, %s68, %s69
      %p73 = pneg %p67
      %p74 = scmp.eq.s32.totalorder %s11, 1
      %p75 = por %p73, %p74
      %p76 = scmp.ne.s32.totalorder %s68, %s71
      %p77 = scmp.eq.s32.totalorder %s11, 0
      %p78 = por %p76, %p77
      %p79 = scmp.ne.s32.totalorder %s68, %s71
      %p80 = scmp.eq.s32.totalorder %s16, 1
      %p81 = por %p79, %p80
      %p82 = scmp.ne.s32.totalorder %s71, %s72
      %p83 = scmp.eq.s32.totalorder %s16, 0
      %p84 = por %p82, %p83
      %p85 = scmp.ne.s32.totalorder %s71, %s72
      %p86 = scmp.eq.s32.totalorder %s17, 1
      %p87 = por %p85, %p86
      %p89 = scmp.ne.s32.totalorder %s72, %s88
      %p90 = scmp.eq.s32.totalorder %s17, 0
      %p91 = por %p89, %p90
      %p92 = scmp.le.s32.totalorder 1, %s11
      %p93 = scmp.lt.s32.totalorder %s11, 3
      %p94 = pnand %p92, %p93
      %p95 = pneg %p94
      // Predicated region
      $region9: #{simple_model_forward.1} parent=5 // pred_check
        _
      $region10: #{simple_model_forward.1} parent=5 // pred_check_branch
        %97 = sbr.rel (%p94) target = $region12
      $region11: #{simple_model_forward.1} parent=5 // pred_region
        %s98 = ssub.s32 %s11, 1
        // Predicated region
        $region13: #{simple_model_forward.1} parent=11 // pred_check
          %p99 = pneg %p58
        $region14: #{simple_model_forward.1} parent=11 // pred_check_branch
          %101 = sbr.rel (%p99) target = $region16
        $region15: #{simple_model_forward.1} parent=11 // pred_region
          _
        $region16: #{simple_model_forward.1} parent=11 // pred_fallthru
          _
      $region12: #{simple_model_forward.1} parent=5 // pred_fallthru
        _
      %p102 = scmp.lt.s32.totalorder %s11, 2
      // Predicated region
      $region17: #{simple_model_forward.1} parent=5 // pred_check
        %p103 = pneg %p102
      $region18: #{simple_model_forward.1} parent=5 // pred_check_branch
        %105 = sbr.rel (%p103) target = $region20
      $region19: #{simple_model_forward.1} parent=5 // pred_region
        // Predicated region
        $region21: #{simple_model_forward.1} parent=19 // pred_check
          %p106 = pneg %p31
        $region22: #{simple_model_forward.1} parent=19 // pred_check_branch
          %108 = sbr.rel (%p106) target = $region24
        $region23: #{simple_model_forward.1} parent=19 // pred_region
          %s109 = sand.u32 %s21, 1
          %s110 = sand.u32 %s21, 1
          %s111 = smul.addr %s110, 16
          %s112 = scalar_lea.vmem [#allocation2], %s111
          %s113 = smul.addr %s11, 8
          %s114 = scalar_lea.vmem %s0, %s113
          // Predicated region
          $region25: #{simple_model_forward.1} parent=23 // pred_check
            _
          $region26: #{simple_model_forward.1} parent=23 // pred_check_branch
            %116 = sbr.rel (0) target = $region28
          $region27: #{simple_model_forward.1} parent=23 // pred_region
            // Predicated region
            $region29: #{simple_model_forward.1} parent=27 // pred_check
              _
            $region30: #{simple_model_forward.1} parent=27 // pred_check_branch
              %118 = sbr.rel (0) target = $region32
            $region31: #{simple_model_forward.1} parent=27 // pred_region
              // Predicated region
              $region44: #{simple_model_forward.1} parent=31 // pred_check
                _
              $region45: #{simple_model_forward.1} parent=31 // pred_check_branch
                %135 = sbr.rel (0) target = $region47
              $region46: #{simple_model_forward.1} parent=31 // pred_region
                loop: start=0, step=1, limit=1
                $region48: #{simple_model_forward.1} parent=46 // loop_pre_header
                  _
                $region49: #{simple_model_forward.1} parent=46 // loop_header
                  %s137 = sphi 0, %s141
                  %p138 = scmp.ge.s32.totalorder %s137, 1
                  %s142 = sphi %s114, %s114
                  %s143 = sphi %s112, %s112
                $region50: #{simple_model_forward.1} parent=46 // loop_header_branch
                  %140 = sbr.rel (%p138) target = $region54
                $region51: #{simple_model_forward.1} parent=46 // loop_body
                  %v144 = vld [vmem:[%s142] sm:$0xff]
                  %145 = vst [vmem:[%s143] sm:$0xff] %v144
                  %v146 = vld [vmem:[%s142 + $0x10] sm:$0xff]
                  %147 = vst [vmem:[%s143 + $0x8] sm:$0xff] %v146
                $region52: #{simple_model_forward.1} parent=46 // loop_footer
                  %s141 = sadd.s32 1, %s137
                $region53: #{simple_model_forward.1} parent=46 // loop_footer_branch
                  %136 = sbr.rel target = $region49
                $region54: #{simple_model_forward.1} parent=46 // loop_exit
                  _
              $region47: #{simple_model_forward.1} parent=31 // pred_fallthru
                _
              // Predicated region
              $region55: #{simple_model_forward.1} parent=31 // pred_check
                _
              $region56: #{simple_model_forward.1} parent=31 // pred_check_branch
                %149 = sbr.rel target = $region58
              $region57: #{simple_model_forward.1} parent=31 // pred_region
                _
              $region58: #{simple_model_forward.1} parent=31 // pred_fallthru
                _
            $region32: #{simple_model_forward.1} parent=27 // pred_fallthru
              _
            // Predicated region
            $region33: #{simple_model_forward.1} parent=27 // pred_check
              _
            $region34: #{simple_model_forward.1} parent=27 // pred_check_branch
              %120 = sbr.rel target = $region36
            $region35: #{simple_model_forward.1} parent=27 // pred_region
              loop: start=0, step=1, limit=1
              $region37: #{simple_model_forward.1} parent=35 // loop_pre_header
                _
              $region38: #{simple_model_forward.1} parent=35 // loop_header
                %s123 = sphi 0, %s127
                %p124 = scmp.ge.s32.totalorder %s123, 1
                %s128 = sphi %s114, %s114
                %s129 = sphi %s112, %s112
              $region39: #{simple_model_forward.1} parent=35 // loop_header_branch
                %126 = sbr.rel (%p124) target = $region43
              $region40: #{simple_model_forward.1} parent=35 // loop_body
                %v130 = vld [vmem:[%s128] sm:$0xff]
                %131 = vst [vmem:[%s129] sm:$0xff] %v130
                %v132 = vld [vmem:[%s128 + $0x10] sm:$0xff]
                %133 = vst [vmem:[%s129 + $0x8] sm:$0xff] %v132
              $region41: #{simple_model_forward.1} parent=35 // loop_footer
                %s127 = sadd.s32 1, %s123
              $region42: #{simple_model_forward.1} parent=35 // loop_footer_branch
                %122 = sbr.rel target = $region38
              $region43: #{simple_model_forward.1} parent=35 // loop_exit
                _
            $region36: #{simple_model_forward.1} parent=27 // pred_fallthru
              _
          $region28: #{simple_model_forward.1} parent=23 // pred_fallthru
            _
          %150 = vnop
        $region24: #{simple_model_forward.1} parent=19 // pred_fallthru
          _
      $region20: #{simple_model_forward.1} parent=5 // pred_fallthru
        _
      %p151 = scmp.le.s32.totalorder 1, %s11
      %p152 = scmp.lt.s32.totalorder %s11, 3
      %p153 = pnand %p151, %p152
      %p154 = pneg %p153
      // Predicated region
      $region59: #{simple_model_forward.1} parent=5 // pred_check
        _
      $region60: #{simple_model_forward.1} parent=5 // pred_check_branch
        %156 = sbr.rel (%p153) target = $region62
      $region61: #{simple_model_forward.1} parent=5 // pred_region
        %s157 = ssub.s32 %s11, 1
        %s158 = sand.u32 %s24, 1
        %s159 = sand.u32 %s24, 1
        %s160 = smul.addr %s159, 16
        %s161 = scalar_lea.vmem [#allocation2], %s160
        // Predicated region
        $region63: #{simple_model_forward.1} parent=61 // pred_check
          %p162 = pneg %p37
        $region64: #{simple_model_forward.1} parent=61 // pred_check_branch
          %164 = sbr.rel (%p162) target = $region66
        $region65: #{simple_model_forward.1} parent=61 // pred_region
          _
        $region66: #{simple_model_forward.1} parent=61 // pred_fallthru
          _
        %s165 = sand.u32 %s24, 1
        %s166 = sand.u32 %s24, 1
        %s167 = smul.addr %s166, 16
        %s168 = scalar_lea.vmem [#allocation2], %s167
        %p169 = pneg %p37
        %p170 = pneg %p34
        %p171 = pneg %p58
        %p172 = pneg %p55
        %p173 = pneg %p84
        %p174 = pneg %p81
        %s175 = sand.u32 %s71, 1
        %s176 = scalar_lea.sflag [#allocation4], %s175
        %s177 = sand.u32 %s71, 1
        %s178 = smul.addr %s177, 8
        %s179 = scalar_lea.vmem [#allocation3], %s178
        %v180 = vld [vmem:[%s161] sm:$0xff]
        %v181 = vld [vmem:[%s161 + $0x8] sm:$0xf]
        %vm182 = vcmask 1043456
        %v183 = vsel %vm182, %v180, 0.0
        %v184 = vrot.slane %v183, 4
        %v185 = vadd.f32 %v183, %v184
        %v186 = vrot.slane %v185, 2
        %v187 = vadd.f32 %v185, %v186
        %v188 = vrot.slane %v187, 1
        %v189 = vadd.f32 %v187, %v188
        %v190 = vmul.f32 %v189, 0.25
        %v192 = vrot.slane %v180, 4
        %v194 = vsel %vm182, %v192, 0.0
        %v195 = vrot.slane %v194, 4
        %v196 = vadd.f32 %v194, %v195
        %v197 = vrot.slane %v196, 2
        %v198 = vadd.f32 %v196, %v197
        %v199 = vrot.slane %v198, 1
        %v200 = vadd.f32 %v198, %v199
        %v201 = vmul.f32 %v200, 0.25
        %v202 = vsel %vm182, %v181, 0.0
        %v203 = vrot.slane %v202, 4
        %v204 = vadd.f32 %v202, %v203
        %v205 = vrot.slane %v204, 2
        %v206 = vadd.f32 %v204, %v205
        %v207 = vrot.slane %v206, 1
        %v208 = vadd.f32 %v206, %v207
        %v209 = vmul.f32 %v208, 0.25
        %v210 = vsel %vm182, %v190, %v201
        %v211 = vsub.f32 %v180, %v210
        %v212 = vsub.f32 %v181, %v209
        %v213 = vmul.f32 %v211, %v211
        %v214 = vmul.f32 %v212, %v212
        %v216 = vrot.slane %v213, 4
        %v218 = vadd.f32 %v213, %v216
        %v219 = vadd.f32 %v218, %v214
        %v220 = vadd.f32 %v219, 1e-12
        %v221 = vrsqrt.pop %v220
        %v222 = vmul.f32 %v219, %v221
        %v224 = vrot.slane %v221, 4
        %v226 = vsel %vm182, %v221, %v224
        %v227 = vmul.f32 %v211, %v226
        %v228 = vmul.f32 %v212, %v221
        %v229 = vsel %vm182, %v227, 0.0
        %v230 = vrot.slane %v229, 4
        %v231 = vadd.f32 %v229, %v230
        %v232 = vrot.slane %v231, 2
        %v233 = vadd.f32 %v231, %v232
        %v234 = vrot.slane %v233, 1
        %v235 = vadd.f32 %v233, %v234
        %v236 = vmul.f32 %v235, 0.25
        %v238 = vrot.slane %v227, 4
        %v240 = vsel %vm182, %v238, 0.0
        %v241 = vrot.slane %v240, 4
        %v242 = vadd.f32 %v240, %v241
        %v243 = vrot.slane %v242, 2
        %v244 = vadd.f32 %v242, %v243
        %v245 = vrot.slane %v244, 1
        %v246 = vadd.f32 %v244, %v245
        %v247 = vmul.f32 %v246, 0.25
        %v248 = vsel %vm182, %v228, 0.0
        %v249 = vrot.slane %v248, 4
        %v250 = vadd.f32 %v248, %v249
        %v251 = vrot.slane %v250, 2
        %v252 = vadd.f32 %v250, %v251
        %v253 = vrot.slane %v252, 1
        %v254 = vadd.f32 %v252, %v253
        %v255 = vmul.f32 %v254, 0.25
        %v256 = vmul.f32 %v236, %v236
        %v257 = vmul.f32 %v247, %v247
        %v258 = vadd.f32 %v256, %v257
        %v259 = vmul.f32 %v255, %v255
        %v260 = vadd.f32 %v258, %v259
        %v261 = vmul.f32 %v219, -2.0
        %v262 = vmul.f32 %v261, 1.442695
        %v263 = vpow.pop %v262
        %v264 = vmul.f32 %v222, 2.0
        %v265 = vmul.f32 %v264, 1.442695
        %v266 = vpow.pop %v265
        %v267 = vsel %vm182, %v263, 0.0
        %v268 = vrot.slane %v267, 4
        %v269 = vadd.f32 %v267, %v268
        %v270 = vrot.slane %v269, 2
        %v271 = vadd.f32 %v269, %v270
        %v272 = vrot.slane %v271, 1
        %v273 = vadd.f32 %v271, %v272
        %v274 = vmul.f32 %v273, 0.25
        %v275 = vmul.f32 %v263, %v266
        %v276 = vsel %vm182, %v275, 0.0
        %v277 = vrot.slane %v276, 4
        %v278 = vadd.f32 %v276, %v277
        %v279 = vrot.slane %v278, 2
        %v280 = vadd.f32 %v278, %v279
        %v281 = vrot.slane %v280, 1
        %v282 = vadd.f32 %v280, %v281
        %v283 = vmul.f32 %v282, 0.25
        %v284 = vmul.f32 %v275, %v266
        %v285 = vsel %vm182, %v284, 0.0
        %v286 = vrot.slane %v285, 4
        %v287 = vadd.f32 %v285, %v286
        %v288 = vrot.slane %v287, 2
        %v289 = vadd.f32 %v287, %v288
        %v290 = vrot.slane %v289, 1
        %v291 = vadd.f32 %v289, %v290
        %v292 = vmul.f32 %v291, 0.25
        %v293 = vmul.f32 %v284, %v266
        %v294 = vsel %vm182, %v293, 0.0
        %v295 = vrot.slane %v294, 4
        %v296 = vadd.f32 %v294, %v295
        %v297 = vrot.slane %v296, 2
        %v298 = vadd.f32 %v296, %v297
        %v299 = vrot.slane %v298, 1
        %v300 = vadd.f32 %v298, %v299
        %v301 = vmul.f32 %v300, 0.25
        %v302 = vmul.f32 %v293, %v266
        %v303 = vsel %vm182, %v302, 0.0
        %v304 = vrot.slane %v303, 4
        %v305 = vadd.f32 %v303, %v304
        %v306 = vrot.slane %v305, 2
        %v307 = vadd.f32 %v305, %v306
        %v308 = vrot.slane %v307, 1
        %v309 = vadd.f32 %v307, %v308
        %v310 = vmul.f32 %v309, 0.25
        %v311 = vmul.f32 %v302, %v266
        %v312 = vsel %vm182, %v311, 0.0
        %v313 = vrot.slane %v312, 4
        %v314 = vadd.f32 %v312, %v313
        %v315 = vrot.slane %v314, 2
        %v316 = vadd.f32 %v314, %v315
        %v317 = vrot.slane %v316, 1
        %v318 = vadd.f32 %v316, %v317
        %v319 = vmul.f32 %v318, 0.25
        %v320 = vmul.f32 %v311, %v266
        %v321 = vsel %vm182, %v320, 0.0
        %v322 = vrot.slane %v321, 4
        %v323 = vadd.f32 %v321, %v322
        %v324 = vrot.slane %v323, 2
        %v325 = vadd.f32 %v323, %v324
        %v326 = vrot.slane %v325, 1
        %v327 = vadd.f32 %v325, %v326
        %v328 = vmul.f32 %v327, 0.25
        %v329 = vmul.f32 %v320, %v266
        %v330 = vsel %vm182, %v329, 0.0
        %v331 = vrot.slane %v330, 4
        %v332 = vadd.f32 %v330, %v331
        %v333 = vrot.slane %v332, 2
        %v334 = vadd.f32 %v332, %v333
        %v335 = vrot.slane %v334, 1
        %v336 = vadd.f32 %v334, %v335
        %v337 = vmul.f32 %v336, 0.25
        %vm338 = vcmask 1040384
        %v339 = vsel %vm338, %v274, %v283
        %vm340 = vcmask 1041408
        %v341 = vsel %vm340, %v339, %v292
        %vm342 = vcmask 1042432
        %v343 = vsel %vm342, %v341, %v301
        %v344 = vsel %vm182, %v343, %v310
        %vm345 = vcmask 1044480
        %v346 = vsel %vm345, %v344, %v319
        %vm347 = vcmask 1045504
        %v348 = vsel %vm347, %v346, %v328
        %vm349 = vcmask 1046528
        %v350 = vsel %vm349, %v348, %v337
        %v351 = vlaneseq
        %v352 = vshrl.u32 %v351, 7
        %v353 = vsub.s32 0, %v352
        %v354 = vrot.slane %v350, %v353
        %v355 = vmul.f32 %v354, %v350
        %v356 = vlaneseq
        %v357 = vshrl.u32 %v356, 7
        %v358 = vsub.s32 1, %v357
        %v359 = vrot.slane %v350, %v358
        %v360 = vmul.f32 %v359, %v350
        %v361 = vlaneseq
        %v362 = vshrl.u32 %v361, 7
        %v363 = vsub.s32 2, %v362
        %v364 = vrot.slane %v350, %v363
        %v365 = vmul.f32 %v364, %v350
        %v366 = vlaneseq
        %v367 = vshrl.u32 %v366, 7
        %v368 = vsub.s32 3, %v367
        %v369 = vrot.slane %v350, %v368
        %v370 = vmul.f32 %v369, %v350
        %v371 = vlaneseq
        %v372 = vshrl.u32 %v371, 7
        %v373 = vsub.s32 4, %v372
        %v374 = vrot.slane %v350, %v373
        %v375 = vmul.f32 %v374, %v350
        %v376 = vlaneseq
        %v377 = vshrl.u32 %v376, 7
        %v378 = vsub.s32 5, %v377
        %v379 = vrot.slane %v350, %v378
        %v380 = vmul.f32 %v379, %v350
        %v381 = vlaneseq
        %v382 = vshrl.u32 %v381, 7
        %v383 = vsub.s32 6, %v382
        %v384 = vrot.slane %v350, %v383
        %v385 = vmul.f32 %v384, %v350
        %v386 = vlaneseq
        %v387 = vshrl.u32 %v386, 7
        %v388 = vsub.s32 7, %v387
        %v389 = vrot.slane %v350, %v388
        %v390 = vmul.f32 %v389, %v350
        %v391 = vsel %vm338, %v260, 1.0
        %v392 = vsel %vm340, %v391, 0.0
        %v393 = vld [vmem:[%s1] sm:$0xff]
        %vm394 = vcmask 588800
        %v396 = vsel %vm394, %v393, 0
        %398 = vmatprep.subr.mxu0 0.0
        %v399 = vand.u32 %v355, 4294901760
        %400 = vmatpush1.msra.mxu0 %v399
        %401 = vmatprep.subr.mxu0 0.0
        %v402 = vand.u32 %v360, 4294901760
        %403 = vmatpush1.msra.mxu0 %v402
        %404 = vmatprep.subr.mxu0 0.0
        %v405 = vand.u32 %v365, 4294901760
        %406 = vmatpush1.msra.mxu0 %v405
        %407 = vmatprep.subr.mxu0 0.0
        %v408 = vand.u32 %v370, 4294901760
        %409 = vmatpush1.msra.mxu0 %v408
        %410 = vmatprep.subr.mxu0 0.0
        %v411 = vand.u32 %v375, 4294901760
        %412 = vmatpush1.msra.mxu0 %v411
        %413 = vmatprep.subr.mxu0 0.0
        %v414 = vand.u32 %v380, 4294901760
        %415 = vmatpush1.msra.mxu0 %v414
        %416 = vmatprep.subr.mxu0 0.0
        %v417 = vand.u32 %v385, 4294901760
        %418 = vmatpush1.msra.mxu0 %v417
        %419 = vmatprep.subr.mxu0 0.0
        %v420 = vand.u32 %v390, 4294901760
        %421 = vmatpush1.msra.mxu0 %v420
        %422 = vmatprep.subr.mxu0 0.0
        %v423 = vand.u32 %v392, 4294901760
        %424 = vmatpush1.msra.mxu0 %v423
        %425 = vmatprep.subr.mxu0 0.0
        %426 = vmatpush1.msra.mxu0 0.0
        %427 = vmatprep.subr.mxu0 0.0
        %428 = vmatpush1.msra.mxu0 0.0
        %429 = vmatprep.subr.mxu0 0.0
        %430 = vmatpush1.msra.mxu0 0.0
        %431 = vmatprep.subr.mxu0 0.0
        %432 = vmatpush1.msra.mxu0 0.0
        %433 = vmatprep.subr.mxu0 0.0
        %434 = vmatpush1.msra.mxu0 0.0
        %435 = vmatprep.subr.mxu0 0.0
        %436 = vmatpush1.msra.mxu0 0.0
        %437 = vmatprep.subr.mxu0 0.0
        %438 = vmatpush1.msra.mxu0 0.0
        %439 = vmatprep.subr.mxu0 0.0
        %440 = vmatpush1.msra.mxu0 0.0
        %441 = vmatprep.subr.mxu0 0.0
        %442 = vmatpush1.msra.mxu0 0.0
        %443 = vmatprep.subr.mxu0 0.0
        %444 = vmatpush1.msra.mxu0 0.0
        %445 = vmatprep.subr.mxu0 0.0
        %446 = vmatpush1.msra.mxu0 0.0
        %447 = vmatprep.subr.mxu0 0.0
        %448 = vmatpush1.msra.mxu0 0.0
        %449 = vmatprep.subr.mxu0 0.0
        %450 = vmatpush1.msra.mxu0 0.0
        %451 = vmatprep.subr.mxu0 0.0
        %452 = vmatpush1.msra.mxu0 0.0
        %453 = vmatprep.subr.mxu0 0.0
        %454 = vmatpush1.msra.mxu0 0.0
        %455 = vmatprep.subr.mxu0 0.0
        %456 = vmatpush1.msra.mxu0 0.0
        %457 = vmatprep.subr.mxu0 0.0
        %458 = vmatpush1.msra.mxu0 0.0
        %459 = vmatprep.subr.mxu0 0.0
        %460 = vmatpush1.msra.mxu0 0.0
        %461 = vmatprep.subr.mxu0 0.0
        %462 = vmatpush1.msra.mxu0 0.0
        %463 = vmatprep.subr.mxu0 0.0
        %464 = vmatpush1.msra.mxu0 0.0
        %465 = vmatprep.subr.mxu0 0.0
        %466 = vmatpush1.msra.mxu0 0.0
        %467 = vmatprep.subr.mxu0 0.0
        %468 = vmatpush1.msra.mxu0 0.0
        %469 = vmatprep.subr.mxu0 0.0
        %470 = vmatpush1.msra.mxu0 0.0
        %471 = vmatprep.mubr.f32.mxu0 0.0
        %v472 = vand.u32 %v396, 4294901760
        %v473 = vsub.f32 %v396, %v472
        %v474 = vand.u32 %v473, 4294901760
        %v475 = vsub.f32 %v473, %v474
        %v476 = vand.u32 %v475, 4294901760
        %477 = vmatmul.mubr.f32.gmra.mrb[0].mxu0 %v476
        %v478 = vpop.f32.mrb[0].mxu0
        %v479 = vadd.f32 0.0, %v478
        %v480 = vpop.f32.mrb[0].mxu0
        %481 = vdwg.mxu0
        %482 = vmatprep.subr.mxu0 0.0
        %v483 = vand.u32 %v355, 4294901760
        %v484 = vsub.f32 %v355, %v483
        %v485 = vand.u32 %v484, 4294901760
        %v486 = vsub.f32 %v484, %v485
        %v487 = vand.u32 %v486, 4294901760
        %488 = vmatpush1.msra.mxu0 %v487
        %489 = vmatprep.subr.mxu0 0.0
        %v490 = vand.u32 %v360, 4294901760
        %v491 = vsub.f32 %v360, %v490
        %v492 = vand.u32 %v491, 4294901760
        %v493 = vsub.f32 %v491, %v492
        %v494 = vand.u32 %v493, 4294901760
        %495 = vmatpush1.msra.mxu0 %v494
        %496 = vmatprep.subr.mxu0 0.0
        %v497 = vand.u32 %v365, 4294901760
        %v498 = vsub.f32 %v365, %v497
        %v499 = vand.u32 %v498, 4294901760
        %v500 = vsub.f32 %v498, %v499
        %v501 = vand.u32 %v500, 4294901760
        %502 = vmatpush1.msra.mxu0 %v501
        %503 = vmatprep.subr.mxu0 0.0
        %v504 = vand.u32 %v370, 4294901760
        %v505 = vsub.f32 %v370, %v504
        %v506 = vand.u32 %v505, 4294901760
        %v507 = vsub.f32 %v505, %v506
        %v508 = vand.u32 %v507, 4294901760
        %509 = vmatpush1.msra.mxu0 %v508
        %510 = vmatprep.subr.mxu0 0.0
        %v511 = vand.u32 %v375, 4294901760
        %v512 = vsub.f32 %v375, %v511
        %v513 = vand.u32 %v512, 4294901760
        %v514 = vsub.f32 %v512, %v513
        %v515 = vand.u32 %v514, 4294901760
        %516 = vmatpush1.msra.mxu0 %v515
        %517 = vmatprep.subr.mxu0 0.0
        %v518 = vand.u32 %v380, 4294901760
        %v519 = vsub.f32 %v380, %v518
        %v520 = vand.u32 %v519, 4294901760
        %v521 = vsub.f32 %v519, %v520
        %v522 = vand.u32 %v521, 4294901760
        %523 = vmatpush1.msra.mxu0 %v522
        %524 = vmatprep.subr.mxu0 0.0
        %v525 = vand.u32 %v385, 4294901760
        %v526 = vsub.f32 %v385, %v525
        %v527 = vand.u32 %v526, 4294901760
        %v528 = vsub.f32 %v526, %v527
        %v529 = vand.u32 %v528, 4294901760
        %530 = vmatpush1.msra.mxu0 %v529
        %531 = vmatprep.subr.mxu0 0.0
        %v532 = vand.u32 %v390, 4294901760
        %v533 = vsub.f32 %v390, %v532
        %v534 = vand.u32 %v533, 4294901760
        %v535 = vsub.f32 %v533, %v534
        %v536 = vand.u32 %v535, 4294901760
        %537 = vmatpush1.msra.mxu0 %v536
        %538 = vmatprep.subr.mxu0 0.0
        %v539 = vand.u32 %v392, 4294901760
        %v540 = vsub.f32 %v392, %v539
        %v541 = vand.u32 %v540, 4294901760
        %v542 = vsub.f32 %v540, %v541
        %v543 = vand.u32 %v542, 4294901760
        %544 = vmatpush1.msra.mxu0 %v543
        %545 = vmatprep.subr.mxu0 0.0
        %546 = vmatpush1.msra.mxu0 0.0
        %547 = vmatprep.subr.mxu0 0.0
        %548 = vmatpush1.msra.mxu0 0.0
        %549 = vmatprep.subr.mxu0 0.0
        %550 = vmatpush1.msra.mxu0 0.0
        %551 = vmatprep.subr.mxu0 0.0
        %552 = vmatpush1.msra.mxu0 0.0
        %553 = vmatprep.subr.mxu0 0.0
        %554 = vmatpush1.msra.mxu0 0.0
        %555 = vmatprep.subr.mxu0 0.0
        %556 = vmatpush1.msra.mxu0 0.0
        %557 = vmatprep.subr.mxu0 0.0
        %558 = vmatpush1.msra.mxu0 0.0
        %559 = vmatprep.subr.mxu0 0.0
        %560 = vmatpush1.msra.mxu0 0.0
        %561 = vmatprep.subr.mxu0 0.0
        %562 = vmatpush1.msra.mxu0 0.0
        %563 = vmatprep.subr.mxu0 0.0
        %564 = vmatpush1.msra.mxu0 0.0
        %565 = vmatprep.subr.mxu0 0.0
        %566 = vmatpush1.msra.mxu0 0.0
        %567 = vmatprep.subr.mxu0 0.0
        %568 = vmatpush1.msra.mxu0 0.0
        %569 = vmatprep.subr.mxu0 0.0
        %570 = vmatpush1.msra.mxu0 0.0
        %571 = vmatprep.subr.mxu0 0.0
        %572 = vmatpush1.msra.mxu0 0.0
        %573 = vmatprep.subr.mxu0 0.0
        %574 = vmatpush1.msra.mxu0 0.0
        %575 = vmatprep.subr.mxu0 0.0
        %576 = vmatpush1.msra.mxu0 0.0
        %577 = vmatprep.subr.mxu0 0.0
        %578 = vmatpush1.msra.mxu0 0.0
        %579 = vmatprep.subr.mxu0 0.0
        %580 = vmatpush1.msra.mxu0 0.0
        %581 = vmatprep.subr.mxu0 0.0
        %582 = vmatpush1.msra.mxu0 0.0
        %583 = vmatprep.subr.mxu0 0.0
        %584 = vmatpush1.msra.mxu0 0.0
        %585 = vmatprep.subr.mxu0 0.0
        %586 = vmatpush1.msra.mxu0 0.0
        %587 = vmatprep.subr.mxu0 0.0
        %588 = vmatpush1.msra.mxu0 0.0
        %589 = vmatprep.subr.mxu0 0.0
        %590 = vmatpush1.msra.mxu0 0.0
        %591 = vmatprep.mubr.f32.mxu0 0.0
        %v592 = vand.u32 %v396, 4294901760
        %593 = vmatmul.mubr.f32.gmra.mrb[0].mxu0 %v592
        %v594 = vpop.f32.mrb[0].mxu0
        %v595 = vadd.f32 %v479, %v594
        %v596 = vpop.f32.mrb[0].mxu0
        %597 = vdwg.mxu0
        %598 = vmatprep.subr.mxu0 0.0
        %v599 = vand.u32 %v355, 4294901760
        %v600 = vsub.f32 %v355, %v599
        %601 = vmatpush1.msra.mxu0 %v600
        %602 = vmatprep.subr.mxu0 0.0
        %v603 = vand.u32 %v360, 4294901760
        %v604 = vsub.f32 %v360, %v603
        %605 = vmatpush1.msra.mxu0 %v604
        %606 = vmatprep.subr.mxu0 0.0
        %v607 = vand.u32 %v365, 4294901760
        %v608 = vsub.f32 %v365, %v607
        %609 = vmatpush1.msra.mxu0 %v608
        %610 = vmatprep.subr.mxu0 0.0
        %v611 = vand.u32 %v370, 4294901760
        %v612 = vsub.f32 %v370, %v611
        %613 = vmatpush1.msra.mxu0 %v612
        %614 = vmatprep.subr.mxu0 0.0
        %v615 = vand.u32 %v375, 4294901760
        %v616 = vsub.f32 %v375, %v615
        %617 = vmatpush1.msra.mxu0 %v616
        %618 = vmatprep.subr.mxu0 0.0
        %v619 = vand.u32 %v380, 4294901760
        %v620 = vsub.f32 %v380, %v619
        %621 = vmatpush1.msra.mxu0 %v620
        %622 = vmatprep.subr.mxu0 0.0
        %v623 = vand.u32 %v385, 4294901760
        %v624 = vsub.f32 %v385, %v623
        %625 = vmatpush1.msra.mxu0 %v624
        %626 = vmatprep.subr.mxu0 0.0
        %v627 = vand.u32 %v390, 4294901760
        %v628 = vsub.f32 %v390, %v627
        %629 = vmatpush1.msra.mxu0 %v628
        %630 = vmatprep.subr.mxu0 0.0
        %v631 = vand.u32 %v392, 4294901760
        %v632 = vsub.f32 %v392, %v631
        %633 = vmatpush1.msra.mxu0 %v632
        %634 = vmatprep.subr.mxu0 0.0
        %635 = vmatpush1.msra.mxu0 0.0
        %636 = vmatprep.subr.mxu0 0.0
        %637 = vmatpush1.msra.mxu0 0.0
        %638 = vmatprep.subr.mxu0 0.0
        %639 = vmatpush1.msra.mxu0 0.0
        %640 = vmatprep.subr.mxu0 0.0
        %641 = vmatpush1.msra.mxu0 0.0
        %642 = vmatprep.subr.mxu0 0.0
        %643 = vmatpush1.msra.mxu0 0.0
        %644 = vmatprep.subr.mxu0 0.0
        %645 = vmatpush1.msra.mxu0 0.0
        %646 = vmatprep.subr.mxu0 0.0
        %647 = vmatpush1.msra.mxu0 0.0
        %648 = vmatprep.subr.mxu0 0.0
        %649 = vmatpush1.msra.mxu0 0.0
        %650 = vmatprep.subr.mxu0 0.0
        %651 = vmatpush1.msra.mxu0 0.0
        %652 = vmatprep.subr.mxu0 0.0
        %653 = vmatpush1.msra.mxu0 0.0
        %654 = vmatprep.subr.mxu0 0.0
        %655 = vmatpush1.msra.mxu0 0.0
        %656 = vmatprep.subr.mxu0 0.0
        %657 = vmatpush1.msra.mxu0 0.0
        %658 = vmatprep.subr.mxu0 0.0
        %659 = vmatpush1.msra.mxu0 0.0
        %660 = vmatprep.subr.mxu0 0.0
        %661 = vmatpush1.msra.mxu0 0.0
        %662 = vmatprep.subr.mxu0 0.0
        %663 = vmatpush1.msra.mxu0 0.0
        %664 = vmatprep.subr.mxu0 0.0
        %665 = vmatpush1.msra.mxu0 0.0
        %666 = vmatprep.subr.mxu0 0.0
        %667 = vmatpush1.msra.mxu0 0.0
        %668 = vmatprep.subr.mxu0 0.0
        %669 = vmatpush1.msra.mxu0 0.0
        %670 = vmatprep.subr.mxu0 0.0
        %671 = vmatpush1.msra.mxu0 0.0
        %672 = vmatprep.subr.mxu0 0.0
        %673 = vmatpush1.msra.mxu0 0.0
        %674 = vmatprep.subr.mxu0 0.0
        %675 = vmatpush1.msra.mxu0 0.0
        %676 = vmatprep.subr.mxu0 0.0
        %677 = vmatpush1.msra.mxu0 0.0
        %678 = vmatprep.subr.mxu0 0.0
        %679 = vmatpush1.msra.mxu0 0.0
        %680 = vmatprep.mubr.f32.mxu0 0.0
        %v681 = vand.u32 %v396, 4294901760
        %v682 = vsub.f32 %v396, %v681
        %683 = vmatmul.mubr.f32.gmra.mrb[0].mxu0 %v682
        %v684 = vpop.f32.mrb[0].mxu0
        %v685 = vadd.f32 %v595, %v684
        %v686 = vpop.f32.mrb[0].mxu0
        %687 = vdwg.mxu0
        %688 = vmatprep.subr.mxu0 0.0
        %v689 = vand.u32 %v355, 4294901760
        %690 = vmatpush1.msra.mxu0 %v689
        %691 = vmatprep.subr.mxu0 0.0
        %v692 = vand.u32 %v360, 4294901760
        %693 = vmatpush1.msra.mxu0 %v692
        %694 = vmatprep.subr.mxu0 0.0
        %v695 = vand.u32 %v365, 4294901760
        %696 = vmatpush1.msra.mxu0 %v695
        %697 = vmatprep.subr.mxu0 0.0
        %v698 = vand.u32 %v370, 4294901760
        %699 = vmatpush1.msra.mxu0 %v698
        %700 = vmatprep.subr.mxu0 0.0
        %v701 = vand.u32 %v375, 4294901760
        %702 = vmatpush1.msra.mxu0 %v701
        %703 = vmatprep.subr.mxu0 0.0
        %v704 = vand.u32 %v380, 4294901760
        %705 = vmatpush1.msra.mxu0 %v704
        %706 = vmatprep.subr.mxu0 0.0
        %v707 = vand.u32 %v385, 4294901760
        %708 = vmatpush1.msra.mxu0 %v707
        %709 = vmatprep.subr.mxu0 0.0
        %v710 = vand.u32 %v390, 4294901760
        %711 = vmatpush1.msra.mxu0 %v710
        %712 = vmatprep.subr.mxu0 0.0
        %v713 = vand.u32 %v392, 4294901760
        %714 = vmatpush1.msra.mxu0 %v713
        %715 = vmatprep.subr.mxu0 0.0
        %716 = vmatpush1.msra.mxu0 0.0
        %717 = vmatprep.subr.mxu0 0.0
        %718 = vmatpush1.msra.mxu0 0.0
        %719 = vmatprep.subr.mxu0 0.0
        %720 = vmatpush1.msra.mxu0 0.0
        %721 = vmatprep.subr.mxu0 0.0
        %722 = vmatpush1.msra.mxu0 0.0
        %723 = vmatprep.subr.mxu0 0.0
        %724 = vmatpush1.msra.mxu0 0.0
        %725 = vmatprep.subr.mxu0 0.0
        %726 = vmatpush1.msra.mxu0 0.0
        %727 = vmatprep.subr.mxu0 0.0
        %728 = vmatpush1.msra.mxu0 0.0
        %729 = vmatprep.subr.mxu0 0.0
        %730 = vmatpush1.msra.mxu0 0.0
        %731 = vmatprep.subr.mxu0 0.0
        %732 = vmatpush1.msra.mxu0 0.0
        %733 = vmatprep.subr.mxu0 0.0
        %734 = vmatpush1.msra.mxu0 0.0
        %735 = vmatprep.subr.mxu0 0.0
        %736 = vmatpush1.msra.mxu0 0.0
        %737 = vmatprep.subr.mxu0 0.0
        %738 = vmatpush1.msra.mxu0 0.0
        %739 = vmatprep.subr.mxu0 0.0
        %740 = vmatpush1.msra.mxu0 0.0
        %741 = vmatprep.subr.mxu0 0.0
        %742 = vmatpush1.msra.mxu0 0.0
        %743 = vmatprep.subr.mxu0 0.0
        %744 = vmatpush1.msra.mxu0 0.0
        %745 = vmatprep.subr.mxu0 0.0
        %746 = vmatpush1.msra.mxu0 0.0
        %747 = vmatprep.subr.mxu0 0.0
        %748 = vmatpush1.msra.mxu0 0.0
        %749 = vmatprep.subr.mxu0 0.0
        %750 = vmatpush1.msra.mxu0 0.0
        %751 = vmatprep.subr.mxu0 0.0
        %752 = vmatpush1.msra.mxu0 0.0
        %753 = vmatprep.subr.mxu0 0.0
        %754 = vmatpush1.msra.mxu0 0.0
        %755 = vmatprep.subr.mxu0 0.0
        %756 = vmatpush1.msra.mxu0 0.0
        %757 = vmatprep.subr.mxu0 0.0
        %758 = vmatpush1.msra.mxu0 0.0
        %759 = vmatprep.subr.mxu0 0.0
        %760 = vmatpush1.msra.mxu0 0.0
        %761 = vmatprep.mubr.f32.mxu0 0.0
        %v762 = vand.u32 %v396, 4294901760
        %v763 = vsub.f32 %v396, %v762
        %v764 = vand.u32 %v763, 4294901760
        %765 = vmatmul.mubr.f32.gmra.mrb[0].mxu0 %v764
        %v766 = vpop.f32.mrb[0].mxu0
        %v767 = vadd.f32 %v685, %v766
        %v768 = vpop.f32.mrb[0].mxu0
        %769 = vdwg.mxu0
        %770 = vmatprep.subr.mxu0 0.0
        %v771 = vand.u32 %v355, 4294901760
        %v772 = vsub.f32 %v355, %v771
        %v773 = vand.u32 %v772, 4294901760
        %774 = vmatpush1.msra.mxu0 %v773
        %775 = vmatprep.subr.mxu0 0.0
        %v776 = vand.u32 %v360, 4294901760
        %v777 = vsub.f32 %v360, %v776
        %v778 = vand.u32 %v777, 4294901760
        %779 = vmatpush1.msra.mxu0 %v778
        %780 = vmatprep.subr.mxu0 0.0
        %v781 = vand.u32 %v365, 4294901760
        %v782 = vsub.f32 %v365, %v781
        %v783 = vand.u32 %v782, 4294901760
        %784 = vmatpush1.msra.mxu0 %v783
        %785 = vmatprep.subr.mxu0 0.0
        %v786 = vand.u32 %v370, 4294901760
        %v787 = vsub.f32 %v370, %v786
        %v788 = vand.u32 %v787, 4294901760
        %789 = vmatpush1.msra.mxu0 %v788
        %790 = vmatprep.subr.mxu0 0.0
        %v791 = vand.u32 %v375, 4294901760
        %v792 = vsub.f32 %v375, %v791
        %v793 = vand.u32 %v792, 4294901760
        %794 = vmatpush1.msra.mxu0 %v793
        %795 = vmatprep.subr.mxu0 0.0
        %v796 = vand.u32 %v380, 4294901760
        %v797 = vsub.f32 %v380, %v796
        %v798 = vand.u32 %v797, 4294901760
        %799 = vmatpush1.msra.mxu0 %v798
        %800 = vmatprep.subr.mxu0 0.0
        %v801 = vand.u32 %v385, 4294901760
        %v802 = vsub.f32 %v385, %v801
        %v803 = vand.u32 %v802, 4294901760
        %804 = vmatpush1.msra.mxu0 %v803
        %805 = vmatprep.subr.mxu0 0.0
        %v806 = vand.u32 %v390, 4294901760
        %v807 = vsub.f32 %v390, %v806
        %v808 = vand.u32 %v807, 4294901760
        %809 = vmatpush1.msra.mxu0 %v808
        %810 = vmatprep.subr.mxu0 0.0
        %v811 = vand.u32 %v392, 4294901760
        %v812 = vsub.f32 %v392, %v811
        %v813 = vand.u32 %v812, 4294901760
        %814 = vmatpush1.msra.mxu0 %v813
        %815 = vmatprep.subr.mxu0 0.0
        %816 = vmatpush1.msra.mxu0 0.0
        %817 = vmatprep.subr.mxu0 0.0
        %818 = vmatpush1.msra.mxu0 0.0
        %819 = vmatprep.subr.mxu0 0.0
        %820 = vmatpush1.msra.mxu0 0.0
        %821 = vmatprep.subr.mxu0 0.0
        %822 = vmatpush1.msra.mxu0 0.0
        %823 = vmatprep.subr.mxu0 0.0
        %824 = vmatpush1.msra.mxu0 0.0
        %825 = vmatprep.subr.mxu0 0.0
        %826 = vmatpush1.msra.mxu0 0.0
        %827 = vmatprep.subr.mxu0 0.0
        %828 = vmatpush1.msra.mxu0 0.0
        %829 = vmatprep.subr.mxu0 0.0
        %830 = vmatpush1.msra.mxu0 0.0
        %831 = vmatprep.subr.mxu0 0.0
        %832 = vmatpush1.msra.mxu0 0.0
        %833 = vmatprep.subr.mxu0 0.0
        %834 = vmatpush1.msra.mxu0 0.0
        %835 = vmatprep.subr.mxu0 0.0
        %836 = vmatpush1.msra.mxu0 0.0
        %837 = vmatprep.subr.mxu0 0.0
        %838 = vmatpush1.msra.mxu0 0.0
        %839 = vmatprep.subr.mxu0 0.0
        %840 = vmatpush1.msra.mxu0 0.0
        %841 = vmatprep.subr.mxu0 0.0
        %842 = vmatpush1.msra.mxu0 0.0
        %843 = vmatprep.subr.mxu0 0.0
        %844 = vmatpush1.msra.mxu0 0.0
        %845 = vmatprep.subr.mxu0 0.0
        %846 = vmatpush1.msra.mxu0 0.0
        %847 = vmatprep.subr.mxu0 0.0
        %848 = vmatpush1.msra.mxu0 0.0
        %849 = vmatprep.subr.mxu0 0.0
        %850 = vmatpush1.msra.mxu0 0.0
        %851 = vmatprep.subr.mxu0 0.0
        %852 = vmatpush1.msra.mxu0 0.0
        %853 = vmatprep.subr.mxu0 0.0
        %854 = vmatpush1.msra.mxu0 0.0
        %855 = vmatprep.subr.mxu0 0.0
        %856 = vmatpush1.msra.mxu0 0.0
        %857 = vmatprep.subr.mxu0 0.0
        %858 = vmatpush1.msra.mxu0 0.0
        %859 = vmatprep.subr.mxu0 0.0
        %860 = vmatpush1.msra.mxu0 0.0
        %861 = vmatprep.mubr.f32.mxu0 0.0
        %v862 = vand.u32 %v396, 4294901760
        %863 = vmatmul.mubr.f32.gmra.mrb[0].mxu0 %v862
        %v864 = vpop.f32.mrb[0].mxu0
        %v865 = vadd.f32 %v767, %v864
        %v866 = vpop.f32.mrb[0].mxu0
        %867 = vdwg.mxu0
        %868 = vmatprep.subr.mxu0 0.0
        %v869 = vand.u32 %v355, 4294901760
        %870 = vmatpush1.msra.mxu0 %v869
        %871 = vmatprep.subr.mxu0 0.0
        %v872 = vand.u32 %v360, 4294901760
        %873 = vmatpush1.msra.mxu0 %v872
        %874 = vmatprep.subr.mxu0 0.0
        %v875 = vand.u32 %v365, 4294901760
        %876 = vmatpush1.msra.mxu0 %v875
        %877 = vmatprep.subr.mxu0 0.0
        %v878 = vand.u32 %v370, 4294901760
        %879 = vmatpush1.msra.mxu0 %v878
        %880 = vmatprep.subr.mxu0 0.0
        %v881 = vand.u32 %v375, 4294901760
        %882 = vmatpush1.msra.mxu0 %v881
        %883 = vmatprep.subr.mxu0 0.0
        %v884 = vand.u32 %v380, 4294901760
        %885 = vmatpush1.msra.mxu0 %v884
        %886 = vmatprep.subr.mxu0 0.0
        %v887 = vand.u32 %v385, 4294901760
        %888 = vmatpush1.msra.mxu0 %v887
        %889 = vmatprep.subr.mxu0 0.0
        %v890 = vand.u32 %v390, 4294901760
        %891 = vmatpush1.msra.mxu0 %v890
        %892 = vmatprep.subr.mxu0 0.0
        %v893 = vand.u32 %v392, 4294901760
        %894 = vmatpush1.msra.mxu0 %v893
        %895 = vmatprep.subr.mxu0 0.0
        %896 = vmatpush1.msra.mxu0 0.0
        %897 = vmatprep.subr.mxu0 0.0
        %898 = vmatpush1.msra.mxu0 0.0
        %899 = vmatprep.subr.mxu0 0.0
        %900 = vmatpush1.msra.mxu0 0.0
        %901 = vmatprep.subr.mxu0 0.0
        %902 = vmatpush1.msra.mxu0 0.0
        %903 = vmatprep.subr.mxu0 0.0
        %904 = vmatpush1.msra.mxu0 0.0
        %905 = vmatprep.subr.mxu0 0.0
        %906 = vmatpush1.msra.mxu0 0.0
        %907 = vmatprep.subr.mxu0 0.0
        %908 = vmatpush1.msra.mxu0 0.0
        %909 = vmatprep.subr.mxu0 0.0
        %910 = vmatpush1.msra.mxu0 0.0
        %911 = vmatprep.subr.mxu0 0.0
        %912 = vmatpush1.msra.mxu0 0.0
        %913 = vmatprep.subr.mxu0 0.0
        %914 = vmatpush1.msra.mxu0 0.0
        %915 = vmatprep.subr.mxu0 0.0
        %916 = vmatpush1.msra.mxu0 0.0
        %917 = vmatprep.subr.mxu0 0.0
        %918 = vmatpush1.msra.mxu0 0.0
        %919 = vmatprep.subr.mxu0 0.0
        %920 = vmatpush1.msra.mxu0 0.0
        %921 = vmatprep.subr.mxu0 0.0
        %922 = vmatpush1.msra.mxu0 0.0
        %923 = vmatprep.subr.mxu0 0.0
        %924 = vmatpush1.msra.mxu0 0.0
        %925 = vmatprep.subr.mxu0 0.0
        %926 = vmatpush1.msra.mxu0 0.0
        %927 = vmatprep.subr.mxu0 0.0
        %928 = vmatpush1.msra.mxu0 0.0
        %929 = vmatprep.subr.mxu0 0.0
        %930 = vmatpush1.msra.mxu0 0.0
        %931 = vmatprep.subr.mxu0 0.0
        %932 = vmatpush1.msra.mxu0 0.0
        %933 = vmatprep.subr.mxu0 0.0
        %934 = vmatpush1.msra.mxu0 0.0
        %935 = vmatprep.subr.mxu0 0.0
        %936 = vmatpush1.msra.mxu0 0.0
        %937 = vmatprep.subr.mxu0 0.0
        %938 = vmatpush1.msra.mxu0 0.0
        %939 = vmatprep.subr.mxu0 0.0
        %940 = vmatpush1.msra.mxu0 0.0
        %941 = vmatprep.mubr.f32.mxu0 0.0
        %v942 = vand.u32 %v396, 4294901760
        %943 = vmatmul.mubr.f32.gmra.mrb[0].mxu0 %v942
        %v944 = vpop.f32.mrb[0].mxu0
        %v945 = vadd.f32 %v865, %v944
        %v946 = vpop.f32.mrb[0].mxu0
        %947 = vdwg.mxu0
        %948 = vst [vmem:[%s179] sm:$0xff] %v945
        %s949 = sand.u32 %s71, 1
        %s950 = scalar_lea.sflag [#allocation4], %s949
        %s951 = sand.u32 %s71, 1
        %s952 = smul.addr %s951, 8
        %s953 = scalar_lea.vmem [#allocation3], %s952
        // Predicated region
        $region67: #{simple_model_forward.1} parent=61 // pred_check
          %p954 = pneg %p81
        $region68: #{simple_model_forward.1} parent=61 // pred_check_branch
          %956 = sbr.rel (%p954) target = $region70
        $region69: #{simple_model_forward.1} parent=61 // pred_region
          %s958 = ssub.s32 128, 128
          %959 = vsyncadd %s950, %s958
          %s960 = smul.addr %s16, 128
          %s961 = scalar_lea.hbm %s2, %s960
          %s963 = sshll.u32 %s953, 4
          %s964 = int_to_ptr.vmem [resolvable:$true] %s963
          %966 = dma.vmem_to_hbm [thread:$0]  %s964, 128, %s961, %s950
        $region70: #{simple_model_forward.1} parent=61 // pred_fallthru
          _
      $region62: #{simple_model_forward.1} parent=5 // pred_fallthru
        _
      %p967 = scmp.le.s32.totalorder 2, %s11
      // Predicated region
      $region71: #{simple_model_forward.1} parent=5 // pred_check
        %p968 = pneg %p967
      $region72: #{simple_model_forward.1} parent=5 // pred_check_branch
        %970 = sbr.rel (%p968) target = $region74
      $region73: #{simple_model_forward.1} parent=5 // pred_region
        %s971 = ssub.s32 %s11, 2
        // Predicated region
        $region75: #{simple_model_forward.1} parent=73 // pred_check
          %p972 = pneg %p87
        $region76: #{simple_model_forward.1} parent=73 // pred_check_branch
          %974 = sbr.rel (%p972) target = $region78
        $region77: #{simple_model_forward.1} parent=73 // pred_region
          %s975 = sand.u32 %s72, 1
          %s976 = scalar_lea.sflag [#allocation4], %s975
          %s977 = sand.u32 %s72, 1
          %s978 = smul.addr %s977, 8
          %s979 = scalar_lea.vmem [#allocation3], %s978
          %980 = dma.done %s976, 128
        $region78: #{simple_model_forward.1} parent=73 // pred_fallthru
          _
      $region74: #{simple_model_forward.1} parent=5 // pred_fallthru
        _
    $region6: #{simple_model_forward.1} parent=1 // loop_footer
      %s15 = sadd.s32 1, %s11
    $region7: #{simple_model_forward.1} parent=1 // loop_footer_branch
      %10 = sbr.rel target = $region3
    $region8: #{simple_model_forward.1} parent=1 // loop_exit
      _
    %981 = vsyncpa [#allocation4], 1
    %s982 = scalar_lea.sflag [#allocation4], 1
    %983 = vsyncpa %s982, 1

</llo_original>
